<compile_context>
chip_gen: v6e
topology: v6e:2x2x1
jax: 0.10.0
libtpu: 0.0.40
codegen_flags: <defaults>
</compile_context>

<pallas_src>
import jax
import jax.numpy as jnp
from jax.experimental import pallas as pl
from jax.experimental.pallas import tpu as pltpu


def _downsample1d_kernel(x_ref, halo_ref, w_ref, s_ref, b_ref, o_ref):
    # x_ref:    (1, C, 2*TL)    contiguous raw-input tile
    # halo_ref: (1, 1, C, 1)    x[:, 2*TL*i - 1]  (zeros for the first tile)
    # w_ref:    (3, C, C)       w_ref[k] = weight[:, :, k]
    # s_ref:    (3, 2*TL, TL)   0/1 parity-selection matrices
    # b_ref:    (C, 1)          bias
    # o_ref:    (1, C, TL)      output tile
    xb = x_ref[0]                      # (C, 2*TL)
    halo = halo_ref[0, 0]              # (C, 1)
    b = b_ref[...]                     # (C, 1)
    tl = o_ref.shape[-1]

    # Parity de-interleave on the MXU: taps at x[2j-1], x[2j], x[2j+1].
    tap_prev = jnp.dot(xb, s_ref[0], preferred_element_type=jnp.float32)
    tap_mid = jnp.dot(xb, s_ref[1], preferred_element_type=jnp.float32)
    tap_next = jnp.dot(xb, s_ref[2], preferred_element_type=jnp.float32)

    # First output column of the tile needs the last sample of the previous
    # tile (or the conv's zero left-pad for the very first tile).
    col0 = (jax.lax.broadcasted_iota(jnp.int32, (1, tl), 1) == 0).astype(xb.dtype)
    tap_prev = tap_prev + halo * col0

    acc = jnp.dot(w_ref[0], tap_prev, preferred_element_type=jnp.float32)
    acc = acc + jnp.dot(w_ref[1], tap_mid, preferred_element_type=jnp.float32)
    acc = acc + jnp.dot(w_ref[2], tap_next, preferred_element_type=jnp.float32)
    acc = acc + b
    o_ref[0] = acc.astype(o_ref.dtype)


def downsample1d(x, weight, bias, *, tile_l=None):
    """Conv1d(dim, dim, kernel=3, stride=2, padding=1) forward.

    x:      (N, C, L)   float32
    weight: (C, C, 3)   PyTorch Conv1d weight layout (out_ch, in_ch, k)
    bias:   (C,)
    returns (N, C, L_out)
    """
    N, C, L = x.shape
    K, stride, pad = 3, 2, 1
    L_out = (L + 2 * pad - K) // stride + 1

    # Output tile length along L_out (lane dim): full L_out for small problems,
    # otherwise a multiple of 128 so output stores are unmasked / lane-dense.
    if tile_l is None:
        tile_l = L_out if L_out <= 256 else 256
    n_tiles = int(pl.cdiv(L_out, tile_l))
    l_out_p = n_tiles * tile_l          # padded L_out (tile multiple)
    l_in = 2 * l_out_p                  # input samples the grid consumes

    # Right-pad x with zeros up to 2*l_out_p (a no-op for even L with L_out a
    # tile multiple).  The conv's left zero-pad is handled by the selection
    # matrix (its first column is all zeros), so no left pad copy is made.
    x_main = x if l_in == L else jnp.pad(x, ((0, 0), (0, 0), (0, l_in - L)))

    # Halo: last input sample of the previous tile, zeros for tile 0.
    if n_tiles > 1:
        h = x_main[:, :, 2 * tile_l - 1 :: 2 * tile_l][:, :, : n_tiles - 1]
        halo = jnp.concatenate([jnp.zeros((N, C, 1), x.dtype), h], axis=-1)
    else:
        halo = jnp.zeros((N, C, 1), x.dtype)
    halo = jnp.transpose(halo, (0, 2, 1))[..., None]      # (N, n_tiles, C, 1)

    w_stack = jnp.transpose(weight, (2, 0, 1))            # (3, C, C)
    b2d = bias.reshape(C, 1)

    # 0/1 selection matrices: S[k][m, t] == 1  iff  m == 2*t + (k - 1).
    m = jnp.arange(2 * tile_l)[:, None]
    t = jnp.arange(tile_l)[None, :]
    s_stack = jnp.stack(
        [(m == 2 * t - 1), (m == 2 * t), (m == 2 * t + 1)]
    ).astype(x.dtype)                                     # (3, 2*TL, TL)

    out = pl.pallas_call(
        _downsample1d_kernel,
        out_shape=jax.ShapeDtypeStruct((N, C, l_out_p), x.dtype),
        grid_spec=pltpu.PrefetchScalarGridSpec(
            num_scalar_prefetch=0,
            grid=(N, n_tiles),
            in_specs=[
                pl.BlockSpec((1, C, 2 * tile_l), lambda n, i: (n, 0, i)),
                pl.BlockSpec((1, 1, C, 1), lambda n, i: (n, i, 0, 0)),
                pl.BlockSpec((3, C, C), lambda n, i: (0, 0, 0)),
                pl.BlockSpec((3, 2 * tile_l, tile_l), lambda n, i: (0, 0, 0)),
                pl.BlockSpec((C, 1), lambda n, i: (0, 0)),
            ],
            out_specs=pl.BlockSpec((1, C, tile_l), lambda n, i: (n, 0, i)),
        ),
        compiler_params=pltpu.CompilerParams(
            dimension_semantics=("parallel", "parallel"),
        ),
    )(x_main, halo, w_stack, s_stack, b2d)

    return out if l_out_p == L_out else out[:, :, :L_out]


def _reference_conv1d(x, weight, bias):
    out = jax.lax.conv_general_dilated(
        x, weight,
        window_strides=(2,),
        padding=((1, 1),),
        dimension_numbers=("NCH", "OIH", "NCH"),
        precision=jax.lax.Precision.HIGHEST,
    )
    return out + bias[None, :, None]


def _make_params(key, c):
    kw, kb = jax.random.split(key)
    fan_in = c * 3
    bound = 1.0 / (fan_in ** 0.5)
    weight = jax.random.uniform(kw, (c, c, 3), jnp.float32, -bound, bound)
    bias = jax.random.uniform(kb, (c,), jnp.float32, -bound, bound)
    return weight, bias


if __name__ == "__main__":
    key = jax.random.PRNGKey(0)
    k1, k2, k3 = jax.random.split(key, 3)

    # Primary small test: Downsample1d(dim=4) on (N=2, C=4, L=16).
    N, C, L = 2, 4, 16
    x = jax.random.normal(k1, (N, C, L), dtype=jnp.float32)
    weight, bias = _make_params(k2, C)
    out = jax.block_until_ready(downsample1d(x, weight, bias))
    ref = _reference_conv1d(x, weight, bias)
    assert out.shape == (N, C, (L + 2 - 3) // 2 + 1)
    assert jnp.allclose(out, ref, atol=1e-4, rtol=1e-4)

    # Secondary check: exercises the multi-tile path (halo column,
    # L_out padding to a 256 multiple, and the wrapper-side slice).
    N2, C2, L2 = 2, 8, 1000
    x2 = jax.random.normal(k3, (N2, C2, L2), dtype=jnp.float32)
    weight2, bias2 = _make_params(k2, C2)
    out2 = jax.block_until_ready(downsample1d(x2, weight2, bias2))
    ref2 = _reference_conv1d(x2, weight2, bias2)
    assert out2.shape == ref2.shape
    assert jnp.allclose(out2, ref2, atol=1e-4, rtol=1e-4)

    print("KERNEL_OK")
</pallas_src>

<mosaic_0001>
module attributes {stable_mosaic.version = 11 : i64} {
  func.func @_downsample1d_kernel(%arg0: i32, %arg1: i32, %arg2: memref<1x4x16xf32, #tpu.memory_space<vmem>>, %arg3: memref<1x1x4x1xf32, #tpu.memory_space<vmem>>, %arg4: memref<3x4x4xf32, #tpu.memory_space<vmem>>, %arg5: memref<3x16x8xf32, #tpu.memory_space<vmem>>, %arg6: memref<4x1xf32, #tpu.memory_space<vmem>>, %arg7: memref<1x4x8xf32, #tpu.memory_space<vmem>>) attributes {dimension_semantics = [#tpu.dimension_semantics<parallel>, #tpu.dimension_semantics<parallel>], iteration_bounds = array<i64: 2, 1>, scalar_prefetch = 0 : i64, scratch_operands = 0 : i64, tpu.core_type = #tpu.core_type<tc>, window_params = [{transform_indices = @transform_0, window_bounds = array<i64: 1, 4, 16>}, {transform_indices = @transform_1, window_bounds = array<i64: 1, 1, 4, 1>}, {pipeline_mode = #tpu.pipeline_mode<synchronous>, transform_indices = @transform_2, window_bounds = array<i64: 3, 4, 4>}, {pipeline_mode = #tpu.pipeline_mode<synchronous>, transform_indices = @transform_3, window_bounds = array<i64: 3, 16, 8>}, {pipeline_mode = #tpu.pipeline_mode<synchronous>, transform_indices = @transform_4, window_bounds = array<i64: 4, 1>}, {transform_indices = @transform_5, window_bounds = array<i64: 1, 4, 8>}]} {
    %c0 = arith.constant 0 : index
    %c0_0 = arith.constant 0 : index
    %c0_1 = arith.constant 0 : index
    %0 = vector.load %arg2[%c0, %c0_0, %c0_1] : memref<1x4x16xf32, #tpu.memory_space<vmem>>, vector<1x4x16xf32>
    %1 = vector.shape_cast %0 : vector<1x4x16xf32> to vector<4x16xf32>
    %c0_2 = arith.constant 0 : index
    %c0_3 = arith.constant 0 : index
    %c0_4 = arith.constant 0 : index
    %c0_5 = arith.constant 0 : index
    %2 = vector.load %arg3[%c0_2, %c0_3, %c0_4, %c0_5] : memref<1x1x4x1xf32, #tpu.memory_space<vmem>>, vector<1x1x4x1xf32>
    %3 = vector.shape_cast %2 : vector<1x1x4x1xf32> to vector<4x1xf32>
    %c0_6 = arith.constant 0 : index
    %c0_7 = arith.constant 0 : index
    %4 = vector.load %arg6[%c0_6, %c0_7] : memref<4x1xf32, #tpu.memory_space<vmem>>, vector<4x1xf32>
    %c0_8 = arith.constant 0 : index
    %c0_9 = arith.constant 0 : index
    %c0_10 = arith.constant 0 : index
    %5 = vector.load %arg5[%c0_8, %c0_9, %c0_10] : memref<3x16x8xf32, #tpu.memory_space<vmem>>, vector<1x16x8xf32>
    %6 = vector.shape_cast %5 : vector<1x16x8xf32> to vector<16x8xf32>
    %cst = arith.constant dense<0.000000e+00> : vector<4x8xf32>
    %7 = tpu.matmul %1, %6, %cst {dimension_numbers = #tpu.dot_dimension_numbers<[1], [0], [0], [1], [0, 0, 1, 1], [], []>} : vector<4x16xf32>, vector<16x8xf32>, vector<4x8xf32> -> vector<4x8xf32>
    %c1 = arith.constant 1 : index
    %c0_11 = arith.constant 0 : index
    %c0_12 = arith.constant 0 : index
    %8 = vector.load %arg5[%c1, %c0_11, %c0_12] : memref<3x16x8xf32, #tpu.memory_space<vmem>>, vector<1x16x8xf32>
    %9 = vector.shape_cast %8 : vector<1x16x8xf32> to vector<16x8xf32>
    %cst_13 = arith.constant dense<0.000000e+00> : vector<4x8xf32>
    %10 = tpu.matmul %1, %9, %cst_13 {dimension_numbers = #tpu.dot_dimension_numbers<[1], [0], [0], [1], [0, 0, 1, 1], [], []>} : vector<4x16xf32>, vector<16x8xf32>, vector<4x8xf32> -> vector<4x8xf32>
    %c2 = arith.constant 2 : index
    %c0_14 = arith.constant 0 : index
    %c0_15 = arith.constant 0 : index
    %11 = vector.load %arg5[%c2, %c0_14, %c0_15] : memref<3x16x8xf32, #tpu.memory_space<vmem>>, vector<1x16x8xf32>
    %12 = vector.shape_cast %11 : vector<1x16x8xf32> to vector<16x8xf32>
    %cst_16 = arith.constant dense<0.000000e+00> : vector<4x8xf32>
    %13 = tpu.matmul %1, %12, %cst_16 {dimension_numbers = #tpu.dot_dimension_numbers<[1], [0], [0], [1], [0, 0, 1, 1], [], []>} : vector<4x16xf32>, vector<16x8xf32>, vector<4x8xf32> -> vector<4x8xf32>
    %14 = tpu.iota {dimensions = array<i32: 1>} : vector<1x8xi32>
    %c0_i32 = arith.constant 0 : i32
    %15 = vector.broadcast %c0_i32 : i32 to vector<1x8xi32>
    %16 = arith.cmpi eq, %14, %15 : vector<1x8xi32>
    %17 = arith.extui %16 : vector<1x8xi1> to vector<1x8xi32>
    %18 = arith.sitofp %17 : vector<1x8xi32> to vector<1x8xf32>
    %19 = vector.broadcast %3 : vector<4x1xf32> to vector<4x8xf32>
    %20 = vector.broadcast %18 : vector<1x8xf32> to vector<4x8xf32>
    %21 = arith.mulf %19, %20 : vector<4x8xf32>
    %22 = arith.addf %7, %21 : vector<4x8xf32>
    %c0_17 = arith.constant 0 : index
    %c0_18 = arith.constant 0 : index
    %c0_19 = arith.constant 0 : index
    %23 = vector.load %arg4[%c0_17, %c0_18, %c0_19] : memref<3x4x4xf32, #tpu.memory_space<vmem>>, vector<1x4x4xf32>
    %24 = vector.shape_cast %23 : vector<1x4x4xf32> to vector<4x4xf32>
    %cst_20 = arith.constant dense<0.000000e+00> : vector<4x8xf32>
    %25 = tpu.matmul %24, %22, %cst_20 {dimension_numbers = #tpu.dot_dimension_numbers<[1], [0], [0], [1], [0, 0, 1, 1], [], []>} : vector<4x4xf32>, vector<4x8xf32>, vector<4x8xf32> -> vector<4x8xf32>
    %c1_21 = arith.constant 1 : index
    %c0_22 = arith.constant 0 : index
    %c0_23 = arith.constant 0 : index
    %26 = vector.load %arg4[%c1_21, %c0_22, %c0_23] : memref<3x4x4xf32, #tpu.memory_space<vmem>>, vector<1x4x4xf32>
    %27 = vector.shape_cast %26 : vector<1x4x4xf32> to vector<4x4xf32>
    %cst_24 = arith.constant dense<0.000000e+00> : vector<4x8xf32>
    %28 = tpu.matmul %27, %10, %cst_24 {dimension_numbers = #tpu.dot_dimension_numbers<[1], [0], [0], [1], [0, 0, 1, 1], [], []>} : vector<4x4xf32>, vector<4x8xf32>, vector<4x8xf32> -> vector<4x8xf32>
    %29 = arith.addf %25, %28 : vector<4x8xf32>
    %c2_25 = arith.constant 2 : index
    %c0_26 = arith.constant 0 : index
    %c0_27 = arith.constant 0 : index
    %30 = vector.load %arg4[%c2_25, %c0_26, %c0_27] : memref<3x4x4xf32, #tpu.memory_space<vmem>>, vector<1x4x4xf32>
    %31 = vector.shape_cast %30 : vector<1x4x4xf32> to vector<4x4xf32>
    %cst_28 = arith.constant dense<0.000000e+00> : vector<4x8xf32>
    %32 = tpu.matmul %31, %13, %cst_28 {dimension_numbers = #tpu.dot_dimension_numbers<[1], [0], [0], [1], [0, 0, 1, 1], [], []>} : vector<4x4xf32>, vector<4x8xf32>, vector<4x8xf32> -> vector<4x8xf32>
    %33 = arith.addf %29, %32 : vector<4x8xf32>
    %34 = vector.broadcast %4 : vector<4x1xf32> to vector<4x8xf32>
    %35 = arith.addf %33, %34 : vector<4x8xf32>
    %c0_29 = arith.constant 0 : index
    %c0_30 = arith.constant 0 : index
    %c0_31 = arith.constant 0 : index
    %36 = vector.load %arg7[%c0_29, %c0_30, %c0_31] : memref<1x4x8xf32, #tpu.memory_space<vmem>>, vector<1x4x8xf32>
    %37 = vector.shape_cast %36 : vector<1x4x8xf32> to vector<4x8xf32>
    %38 = vector.shape_cast %35 : vector<4x8xf32> to vector<1x4x8xf32>
    tpu.vector_store %arg7[%c0_29, %c0_30, %c0_31], %38 {strides = array<i32>} : memref<1x4x8xf32, #tpu.memory_space<vmem>>, vector<1x4x8xf32>,
    return
  }
  func.func @transform_0(%arg0: i32, %arg1: i32) -> (i32, i32, i32) {
    %c0_i32 = arith.constant 0 : i32
    %c0_i32_0 = arith.constant 0 : i32
    return %arg0, %c0_i32, %arg1 : i32, i32, i32
  }
  func.func @transform_1(%arg0: i32, %arg1: i32) -> (i32, i32, i32, i32) {
    %c0_i32 = arith.constant 0 : i32
    %c0_i32_0 = arith.constant 0 : i32
    %c0_i32_1 = arith.constant 0 : i32
    return %arg0, %arg1, %c0_i32, %c0_i32_0 : i32, i32, i32, i32
  }
  func.func @transform_2(%arg0: i32, %arg1: i32) -> (i32, i32, i32) {
    %c0_i32 = arith.constant 0 : i32
    %c0_i32_0 = arith.constant 0 : i32
    %c0_i32_1 = arith.constant 0 : i32
    %c0_i32_2 = arith.constant 0 : i32
    return %c0_i32, %c0_i32_0, %c0_i32_1 : i32, i32, i32
  }
  func.func @transform_3(%arg0: i32, %arg1: i32) -> (i32, i32, i32) {
    %c0_i32 = arith.constant 0 : i32
    %c0_i32_0 = arith.constant 0 : i32
    %c0_i32_1 = arith.constant 0 : i32
    %c0_i32_2 = arith.constant 0 : i32
    return %c0_i32, %c0_i32_0, %c0_i32_1 : i32, i32, i32
  }
  func.func @transform_4(%arg0: i32, %arg1: i32) -> (i32, i32) {
    %c0_i32 = arith.constant 0 : i32
    %c0_i32_0 = arith.constant 0 : i32
    %c0_i32_1 = arith.constant 0 : i32
    return %c0_i32, %c0_i32_0 : i32, i32
  }
  func.func @transform_5(%arg0: i32, %arg1: i32) -> (i32, i32, i32) {
    %c0_i32 = arith.constant 0 : i32
    %c0_i32_0 = arith.constant 0 : i32
    return %arg0, %c0_i32, %arg1 : i32, i32, i32
  }
}

</mosaic_0001>

<llo_original>
// kernel: tpu_custom_call.1
$region0: #{tpu_custom_call.1}
  #allocation0 [shape = 'u32[]', space=smem, size = 0x4, offset = 0x4, fixed_abs, tag = 'smem constant byte address 0x4 - core index']
  #allocation1 [shape = 'u32[144,128]{1,0:T(1,128)}', space=vmem, size = 0x12000, scoped, tag = 'internal scratch']
  %s0 = inlined_call_operand.vmem [shape: f32[2,4,16], index: 0, kind: input, shape index: {}]
  %s1 = inlined_call_operand.vmem [shape: f32[2,1,4,1], index: 1, kind: input, shape index: {}]
  %s2 = inlined_call_operand.vmem [shape: f32[3,4,4], index: 2, kind: input, shape index: {}]
  %s3 = inlined_call_operand.vmem [shape: f32[3,16,8], index: 3, kind: input, shape index: {}]
  %s4 = inlined_call_operand.vmem [shape: f32[4,1], index: 4, kind: input, shape index: {}]
  %s5 = inlined_call_operand.hbm [shape: f32[2,4,8], index: 5, kind: output, shape index: {}]
  %s6 = sld [smem:[#allocation0]]
  $region53: #{tpu_custom_call.1} parent=0
    _
  %s8 = ssub.s32 1, %s6
  %s9 = scalar_select 0, %s8, %s6
  $region1: #{tpu_custom_call.1} parent=0
    #allocation2 [shape = 'u8[4096]{0}', space=vmem, size = 0x1000, scoped, tag = 'output window, operand 0']
    #allocation3 [shape = 's32[2]{0}', space=sflag, size = 0x8, scoped, tag = 'scoped memory for tpu_custom_call.1']
    %10 = vsyncpa [#allocation3], 0
    %s11 = scalar_lea.sflag [#allocation3], 1
    %12 = vsyncpa %s11, 0
    loop: start=0, step=1, limit=4
    $region2: #{tpu_custom_call.1} parent=1 // loop_pre_header
      _
    $region3: #{tpu_custom_call.1} parent=1 // loop_header
      %s14 = sphi 0, %s18
      %p15 = scmp.ge.s32.totalorder %s14, 4
      %s21 = sphi 0, %s33
      %s22 = sphi 0, %s29
      %s23 = sphi 0, %s21
      %s24 = sphi 0, %s22
      %s25 = sphi 0, %s23
      %s26 = sphi 0, %s24
      %s38 = sphi 0, %s40
      %s41 = sphi 0, %s38
      %s42 = sphi 0, %s41
      %s58 = sphi 0, %s42
      %s66 = sphi 0, %s68
      %s69 = sphi 0, %s66
      %s70 = sphi 0, %s69
      %s86 = sphi 0, %s70
      %s90 = sphi 0, %s90
      %s92 = sphi 0, %s90
      %s93 = sphi 0, %s92
      %s107 = sphi 0, %s93
      %s111 = sphi 0, %s111
      %s113 = sphi 0, %s111
      %s114 = sphi 0, %s113
      %s128 = sphi 0, %s114
      %s132 = sphi 0, %s132
      %s134 = sphi 0, %s132
      %s135 = sphi 0, %s134
      %s149 = sphi 0, %s135
      %s157 = sphi 0, %s159
      %s160 = sphi 0, %s157
      %s161 = sphi 0, %s160
      %s177 = sphi 0, %s161
    $region4: #{tpu_custom_call.1} parent=1 // loop_header_branch
      %17 = sbr.rel (%p15) target = $region8
    $region5: #{tpu_custom_call.1} parent=1 // loop_body
      %s19 = ssub.s32 %s14, 1
      %s20 = ssub.s32 %s14, 2
      %s27 = sadd.s32 1, %s22
      %p28 = scmp.ge.s32.totalorder %s27, 1
      %s29 = scalar_select %p28, 0, %s27
      %s30 = sadd.s32 1, %s21
      %s31 = scalar_select %p28, %s30, %s21
      %p32 = scmp.ge.s32.totalorder %s31, 2
      %s33 = scalar_select %p32, 0, %s31
      %s34 = ssub.s32 %s21, %s33
      %s35 = ssub.s32 %s22, %s29
      %s36 = sor.u32 %s34, %s35
      %p37 = scmp.eq.s32.totalorder %s36, 0
      %s39 = sadd.s32 %s38, 1
      %s40 = scalar_select %p37, %s38, %s39
      %p43 = pneg %p37
      %p44 = scmp.eq.s32.totalorder %s14, 1
      %p45 = por %p43, %p44
      %p46 = scmp.ne.s32.totalorder %s38, %s41
      %p47 = scmp.eq.s32.totalorder %s14, 0
      %p48 = por %p46, %p47
      %p49 = scmp.ne.s32.totalorder %s38, %s41
      %p50 = scmp.eq.s32.totalorder %s19, 1
      %p51 = por %p49, %p50
      %p52 = scmp.ne.s32.totalorder %s41, %s42
      %p53 = scmp.eq.s32.totalorder %s19, 0
      %p54 = por %p52, %p53
      %p55 = scmp.ne.s32.totalorder %s41, %s42
      %p56 = scmp.eq.s32.totalorder %s20, 1
      %p57 = por %p55, %p56
      %p59 = scmp.ne.s32.totalorder %s42, %s58
      %p60 = scmp.eq.s32.totalorder %s20, 0
      %p61 = por %p59, %p60
      %s62 = ssub.s32 %s21, %s33
      %s63 = ssub.s32 %s22, %s29
      %s64 = sor.u32 %s62, %s63
      %p65 = scmp.eq.s32.totalorder %s64, 0
      %s67 = sadd.s32 %s66, 1
      %s68 = scalar_select %p65, %s66, %s67
      %p71 = pneg %p65
      %p72 = scmp.eq.s32.totalorder %s14, 1
      %p73 = por %p71, %p72
      %p74 = scmp.ne.s32.totalorder %s66, %s69
      %p75 = scmp.eq.s32.totalorder %s14, 0
      %p76 = por %p74, %p75
      %p77 = scmp.ne.s32.totalorder %s66, %s69
      %p78 = scmp.eq.s32.totalorder %s19, 1
      %p79 = por %p77, %p78
      %p80 = scmp.ne.s32.totalorder %s69, %s70
      %p81 = scmp.eq.s32.totalorder %s19, 0
      %p82 = por %p80, %p81
      %p83 = scmp.ne.s32.totalorder %s69, %s70
      %p84 = scmp.eq.s32.totalorder %s20, 1
      %p85 = por %p83, %p84
      %p87 = scmp.ne.s32.totalorder %s70, %s86
      %p88 = scmp.eq.s32.totalorder %s20, 0
      %p89 = por %p87, %p88
      %s91 = sadd.s32 %s90, 1
      %p94 = scmp.eq.s32.totalorder %s14, 1
      %p95 = scmp.ne.s32.totalorder %s90, %s92
      %p96 = scmp.eq.s32.totalorder %s14, 0
      %p97 = por %p95, %p96
      %p98 = scmp.ne.s32.totalorder %s90, %s92
      %p99 = scmp.eq.s32.totalorder %s19, 1
      %p100 = por %p98, %p99
      %p101 = scmp.ne.s32.totalorder %s92, %s93
      %p102 = scmp.eq.s32.totalorder %s19, 0
      %p103 = por %p101, %p102
      %p104 = scmp.ne.s32.totalorder %s92, %s93
      %p105 = scmp.eq.s32.totalorder %s20, 1
      %p106 = por %p104, %p105
      %p108 = scmp.ne.s32.totalorder %s93, %s107
      %p109 = scmp.eq.s32.totalorder %s20, 0
      %p110 = por %p108, %p109
      %s112 = sadd.s32 %s111, 1
      %p115 = scmp.eq.s32.totalorder %s14, 1
      %p116 = scmp.ne.s32.totalorder %s111, %s113
      %p117 = scmp.eq.s32.totalorder %s14, 0
      %p118 = por %p116, %p117
      %p119 = scmp.ne.s32.totalorder %s111, %s113
      %p120 = scmp.eq.s32.totalorder %s19, 1
      %p121 = por %p119, %p120
      %p122 = scmp.ne.s32.totalorder %s113, %s114
      %p123 = scmp.eq.s32.totalorder %s19, 0
      %p124 = por %p122, %p123
      %p125 = scmp.ne.s32.totalorder %s113, %s114
      %p126 = scmp.eq.s32.totalorder %s20, 1
      %p127 = por %p125, %p126
      %p129 = scmp.ne.s32.totalorder %s114, %s128
      %p130 = scmp.eq.s32.totalorder %s20, 0
      %p131 = por %p129, %p130
      %s133 = sadd.s32 %s132, 1
      %p136 = scmp.eq.s32.totalorder %s14, 1
      %p137 = scmp.ne.s32.totalorder %s132, %s134
      %p138 = scmp.eq.s32.totalorder %s14, 0
      %p139 = por %p137, %p138
      %p140 = scmp.ne.s32.totalorder %s132, %s134
      %p141 = scmp.eq.s32.totalorder %s19, 1
      %p142 = por %p140, %p141
      %p143 = scmp.ne.s32.totalorder %s134, %s135
      %p144 = scmp.eq.s32.totalorder %s19, 0
      %p145 = por %p143, %p144
      %p146 = scmp.ne.s32.totalorder %s134, %s135
      %p147 = scmp.eq.s32.totalorder %s20, 1
      %p148 = por %p146, %p147
      %p150 = scmp.ne.s32.totalorder %s135, %s149
      %p151 = scmp.eq.s32.totalorder %s20, 0
      %p152 = por %p150, %p151
      %s153 = ssub.s32 %s21, %s33
      %s154 = ssub.s32 %s22, %s29
      %s155 = sor.u32 %s153, %s154
      %p156 = scmp.eq.s32.totalorder %s155, 0
      %s158 = sadd.s32 %s157, 1
      %s159 = scalar_select %p156, %s157, %s158
      %p162 = pneg %p156
      %p163 = scmp.eq.s32.totalorder %s14, 1
      %p164 = por %p162, %p163
      %p165 = scmp.ne.s32.totalorder %s157, %s160
      %p166 = scmp.eq.s32.totalorder %s14, 0
      %p167 = por %p165, %p166
      %p168 = scmp.ne.s32.totalorder %s157, %s160
      %p169 = scmp.eq.s32.totalorder %s19, 1
      %p170 = por %p168, %p169
      %p171 = scmp.ne.s32.totalorder %s160, %s161
      %p172 = scmp.eq.s32.totalorder %s19, 0
      %p173 = por %p171, %p172
      %p174 = scmp.ne.s32.totalorder %s160, %s161
      %p175 = scmp.eq.s32.totalorder %s20, 1
      %p176 = por %p174, %p175
      %p178 = scmp.ne.s32.totalorder %s161, %s177
      %p179 = scmp.eq.s32.totalorder %s20, 0
      %p180 = por %p178, %p179
      %p181 = scmp.le.s32.totalorder 1, %s14
      %p182 = scmp.lt.s32.totalorder %s14, 3
      %p183 = pnand %p181, %p182
      %p184 = pneg %p183
      // Predicated region
      $region9: #{tpu_custom_call.1} parent=5 // pred_check
        _
      $region10: #{tpu_custom_call.1} parent=5 // pred_check_branch
        %186 = sbr.rel (%p183) target = $region12
      $region11: #{tpu_custom_call.1} parent=5 // pred_region
        %s187 = ssub.s32 %s14, 1
        // Predicated region
        $region13: #{tpu_custom_call.1} parent=11 // pred_check
          %p188 = pneg %p103
        $region14: #{tpu_custom_call.1} parent=11 // pred_check_branch
          %190 = sbr.rel (%p188) target = $region16
        $region15: #{tpu_custom_call.1} parent=11 // pred_region
          _
        $region16: #{tpu_custom_call.1} parent=11 // pred_fallthru
          _
        // Predicated region
        $region17: #{tpu_custom_call.1} parent=11 // pred_check
          %p191 = pneg %p124
        $region18: #{tpu_custom_call.1} parent=11 // pred_check_branch
          %193 = sbr.rel (%p191) target = $region20
        $region19: #{tpu_custom_call.1} parent=11 // pred_region
          _
        $region20: #{tpu_custom_call.1} parent=11 // pred_fallthru
          _
        // Predicated region
        $region21: #{tpu_custom_call.1} parent=11 // pred_check
          %p194 = pneg %p145
        $region22: #{tpu_custom_call.1} parent=11 // pred_check_branch
          %196 = sbr.rel (%p194) target = $region24
        $region23: #{tpu_custom_call.1} parent=11 // pred_region
          _
        $region24: #{tpu_custom_call.1} parent=11 // pred_fallthru
          _
      $region12: #{tpu_custom_call.1} parent=5 // pred_fallthru
        _
      %p197 = scmp.lt.s32.totalorder %s14, 2
      // Predicated region
      $region25: #{tpu_custom_call.1} parent=5 // pred_check
        %p198 = pneg %p197
      $region26: #{tpu_custom_call.1} parent=5 // pred_check_branch
        %200 = sbr.rel (%p198) target = $region28
      $region27: #{tpu_custom_call.1} parent=5 // pred_region
        // Predicated region
        $region29: #{tpu_custom_call.1} parent=27 // pred_check
          %p201 = pneg %p48
        $region30: #{tpu_custom_call.1} parent=27 // pred_check_branch
          %203 = sbr.rel (%p201) target = $region32
        $region31: #{tpu_custom_call.1} parent=27 // pred_region
          %p204 = scmp.lt.s32.totalorder %s21, 1
          %s205 = scalar_select %p204, %s21, 1
          %p206 = scmp.lt.s32.totalorder %s22, 0
          %s207 = scalar_select %p206, %s22, 0
          %s208 = sadd.s32 %s207, %s205
          %s209 = smul.addr %s208, 4
          %s210 = scalar_lea.vmem %s0, %s209
        $region32: #{tpu_custom_call.1} parent=27 // pred_fallthru
          _
        // Predicated region
        $region33: #{tpu_custom_call.1} parent=27 // pred_check
          %p211 = pneg %p76
        $region34: #{tpu_custom_call.1} parent=27 // pred_check_branch
          %213 = sbr.rel (%p211) target = $region36
        $region35: #{tpu_custom_call.1} parent=27 // pred_region
          %p214 = scmp.lt.s32.totalorder %s21, 1
          %s215 = scalar_select %p214, %s21, 1
          %p216 = scmp.lt.s32.totalorder %s22, 0
          %s217 = scalar_select %p216, %s22, 0
          %s218 = sadd.s32 %s217, %s215
          %s219 = smul.addr %s218, 4
          %s220 = scalar_lea.vmem %s1, %s219
        $region36: #{tpu_custom_call.1} parent=27 // pred_fallthru
          _
      $region28: #{tpu_custom_call.1} parent=5 // pred_fallthru
        _
      %p221 = scmp.le.s32.totalorder 1, %s14
      %p222 = scmp.lt.s32.totalorder %s14, 3
      %p223 = pnand %p221, %p222
      %p224 = pneg %p223
      // Predicated region
      $region37: #{tpu_custom_call.1} parent=5 // pred_check
        _
      $region38: #{tpu_custom_call.1} parent=5 // pred_check_branch
        %226 = sbr.rel (%p223) target = $region40
      $region39: #{tpu_custom_call.1} parent=5 // pred_region
        %s227 = ssub.s32 %s14, 1
        %p228 = scmp.lt.s32.totalorder %s23, 1
        %s229 = scalar_select %p228, %s23, 1
        %p230 = scmp.lt.s32.totalorder %s24, 0
        %s231 = scalar_select %p230, %s24, 0
        %s232 = sadd.s32 %s231, %s229
        %s233 = smul.addr %s232, 4
        %s234 = scalar_lea.vmem %s0, %s233
        %p235 = pneg %p54
        %p236 = pneg %p51
        %p237 = scmp.lt.s32.totalorder %s23, 1
        %s238 = scalar_select %p237, %s23, 1
        %p239 = scmp.lt.s32.totalorder %s24, 0
        %s240 = scalar_select %p239, %s24, 0
        %s241 = sadd.s32 %s240, %s238
        %s242 = smul.addr %s241, 4
        %s243 = scalar_lea.vmem %s1, %s242
        %p244 = pneg %p82
        %p245 = pneg %p79
        %p246 = pneg %p103
        %p247 = pneg %p100
        %p248 = pneg %p124
        %p249 = pneg %p121
        %p250 = pneg %p145
        %p251 = pneg %p142
        %p252 = pneg %p173
        %p253 = pneg %p170
        %s254 = sand.u32 %s160, 1
        %s255 = scalar_lea.sflag [#allocation3], %s254
        %s256 = sand.u32 %s160, 1
        %s257 = smul.addr %s256, 4
        %s258 = scalar_lea.vmem [#allocation2], %s257
        %p259 = scmp.lt.s32.totalorder %s23, 1
        %s260 = scalar_select %p259, %s23, 1
        %p261 = scmp.lt.s32.totalorder %s24, 0
        %s262 = scalar_select %p261, %s24, 0
        %s263 = sadd.s32 %s262, %s260
        %s264 = smul.addr %s263, 4
        %s265 = scalar_lea.vmem %s0, %s264
        %p266 = scmp.lt.s32.totalorder %s23, 1
        %s267 = scalar_select %p266, %s23, 1
        %p268 = scmp.lt.s32.totalorder %s24, 0
        %s269 = scalar_select %p268, %s24, 0
        %s270 = sadd.s32 %s269, %s267
        %s271 = smul.addr %s270, 4
        %s272 = scalar_lea.vmem %s1, %s271
        %v273 = vld [vmem:[%s265] sm:$0xf]
        %v274 = vld [vmem:[%s272] sm:$0xf]
        %v275 = vld [vmem:[%s4] sm:$0xf]
        %v276 = vld [vmem:[%s3] sm:$0xff]
        %v277 = vld [vmem:[%s3 + $0x8] sm:$0xff]
        %s278 = scalar_lea.vmem %s3, 16
        %v279 = vld [vmem:[%s278] sm:$0xff]
        %v280 = vld [vmem:[%s278 + $0x8] sm:$0xff]
        %vm281 = vcmask 130048
        %v283 = vsel %vm281, %v273, 0
        %285 = vmatprep.subr.mxu0 0.0
        %286 = vmatpush1.msra.mxu0 0.0
        %287 = vmatprep.subr.mxu0 0.0
        %288 = vmatpush1.msra.mxu0 0.0
        %289 = vmatprep.subr.mxu0 0.0
        %290 = vmatpush1.msra.mxu0 0.0
        %291 = vmatprep.subr.mxu0 0.0
        %292 = vmatpush1.msra.mxu0 0.0
        %293 = vmatprep.subr.mxu0 0.0
        %294 = vmatpush1.msra.mxu0 0.0
        %295 = vmatprep.subr.mxu0 0.0
        %296 = vmatpush1.msra.mxu0 0.0
        %297 = vmatprep.subr.mxu0 0.0
        %298 = vmatpush1.msra.mxu0 0.0
        %299 = vmatprep.subr.mxu0 0.0
        %300 = vmatpush1.msra.mxu0 0.0
        %301 = vmatprep.subr.mxu0 0.0
        %302 = vmatpush1.msra.mxu0 0.0
        %303 = vmatprep.subr.mxu0 0.0
        %304 = vmatpush1.msra.mxu0 0.0
        %305 = vmatprep.subr.mxu0 0.0
        %306 = vmatpush1.msra.mxu0 0.0
        %307 = vmatprep.subr.mxu0 0.0
        %308 = vmatpush1.msra.mxu0 0.0
        %309 = vmatprep.subr.mxu0 0.0
        %310 = vmatpush1.msra.mxu0 0.0
        %311 = vmatprep.subr.mxu0 0.0
        %312 = vmatpush1.msra.mxu0 0.0
        %313 = vmatprep.subr.mxu0 0.0
        %314 = vmatpush1.msra.mxu0 %v280
        %315 = vmatprep.subr.mxu0 0.0
        %316 = vmatpush1.msra.mxu0 %v279
        %317 = vmatprep.subr.mxu0 0.0
        %318 = vmatpush2.msra.mxu0 0.0
        %319 = vmatprep.subr.mxu0 0.0
        %320 = vmatpush2.msra.mxu0 0.0
        %321 = vmatprep.subr.mxu0 0.0
        %322 = vmatpush2.msra.mxu0 0.0
        %323 = vmatprep.subr.mxu0 0.0
        %324 = vmatpush2.msra.mxu0 0.0
        %325 = vmatprep.subr.mxu0 0.0
        %326 = vmatpush2.msra.mxu0 0.0
        %327 = vmatprep.subr.mxu0 0.0
        %328 = vmatpush2.msra.mxu0 0.0
        %329 = vmatprep.subr.mxu0 0.0
        %330 = vmatpush2.msra.mxu0 0.0
        %331 = vmatprep.subr.mxu0 0.0
        %332 = vmatpush2.msra.mxu0 0.0
        %333 = vmatprep.subr.mxu0 0.0
        %334 = vmatpush2.msra.mxu0 0.0
        %335 = vmatprep.subr.mxu0 0.0
        %336 = vmatpush2.msra.mxu0 0.0
        %337 = vmatprep.subr.mxu0 0.0
        %338 = vmatpush2.msra.mxu0 0.0
        %339 = vmatprep.subr.mxu0 0.0
        %340 = vmatpush2.msra.mxu0 0.0
        %341 = vmatprep.subr.mxu0 0.0
        %342 = vmatpush2.msra.mxu0 0.0
        %343 = vmatprep.subr.mxu0 0.0
        %344 = vmatpush2.msra.mxu0 0.0
        %345 = vmatprep.subr.mxu0 0.0
        %346 = vmatpush2.msra.mxu0 0.0
        %347 = vmatprep.subr.mxu0 0.0
        %348 = vmatpush2.msra.mxu0 0.0
        %349 = vmatprep.mubr.f32.mxu0 0.0
        %350 = vmatmul.mubr.f32.gmra.mxu0 %v283
        %v351 = vpop.f32.mrf.mxu0
        %v352 = vadd.f32 0.0, %v351
        %v353 = vpop.f32.mrf.mxu0
        %354 = vdwg.mxu0
        %s355 = scalar_lea.vmem %s3, 32
        %v356 = vld [vmem:[%s355] sm:$0xff]
        %v357 = vld [vmem:[%s355 + $0x8] sm:$0xff]
        %358 = vmatprep.subr.mxu0 0.0
        %359 = vmatpush1.msra.mxu0 0.0
        %360 = vmatprep.subr.mxu0 0.0
        %361 = vmatpush1.msra.mxu0 0.0
        %362 = vmatprep.subr.mxu0 0.0
        %363 = vmatpush1.msra.mxu0 0.0
        %364 = vmatprep.subr.mxu0 0.0
        %365 = vmatpush1.msra.mxu0 0.0
        %366 = vmatprep.subr.mxu0 0.0
        %367 = vmatpush1.msra.mxu0 0.0
        %368 = vmatprep.subr.mxu0 0.0
        %369 = vmatpush1.msra.mxu0 0.0
        %370 = vmatprep.subr.mxu0 0.0
        %371 = vmatpush1.msra.mxu0 0.0
        %372 = vmatprep.subr.mxu0 0.0
        %373 = vmatpush1.msra.mxu0 0.0
        %374 = vmatprep.subr.mxu0 0.0
        %375 = vmatpush1.msra.mxu0 0.0
        %376 = vmatprep.subr.mxu0 0.0
        %377 = vmatpush1.msra.mxu0 0.0
        %378 = vmatprep.subr.mxu0 0.0
        %379 = vmatpush1.msra.mxu0 0.0
        %380 = vmatprep.subr.mxu0 0.0
        %381 = vmatpush1.msra.mxu0 0.0
        %382 = vmatprep.subr.mxu0 0.0
        %383 = vmatpush1.msra.mxu0 0.0
        %384 = vmatprep.subr.mxu0 0.0
        %385 = vmatpush1.msra.mxu0 0.0
        %386 = vmatprep.subr.mxu0 0.0
        %387 = vmatpush1.msra.mxu0 %v357
        %388 = vmatprep.subr.mxu0 0.0
        %389 = vmatpush1.msra.mxu0 %v356
        %390 = vmatprep.subr.mxu0 0.0
        %391 = vmatpush2.msra.mxu0 0.0
        %392 = vmatprep.subr.mxu0 0.0
        %393 = vmatpush2.msra.mxu0 0.0
        %394 = vmatprep.subr.mxu0 0.0
        %395 = vmatpush2.msra.mxu0 0.0
        %396 = vmatprep.subr.mxu0 0.0
        %397 = vmatpush2.msra.mxu0 0.0
        %398 = vmatprep.subr.mxu0 0.0
        %399 = vmatpush2.msra.mxu0 0.0
        %400 = vmatprep.subr.mxu0 0.0
        %401 = vmatpush2.msra.mxu0 0.0
        %402 = vmatprep.subr.mxu0 0.0
        %403 = vmatpush2.msra.mxu0 0.0
        %404 = vmatprep.subr.mxu0 0.0
        %405 = vmatpush2.msra.mxu0 0.0
        %406 = vmatprep.subr.mxu0 0.0
        %407 = vmatpush2.msra.mxu0 0.0
        %408 = vmatprep.subr.mxu0 0.0
        %409 = vmatpush2.msra.mxu0 0.0
        %410 = vmatprep.subr.mxu0 0.0
        %411 = vmatpush2.msra.mxu0 0.0
        %412 = vmatprep.subr.mxu0 0.0
        %413 = vmatpush2.msra.mxu0 0.0
        %414 = vmatprep.subr.mxu0 0.0
        %415 = vmatpush2.msra.mxu0 0.0
        %416 = vmatprep.subr.mxu0 0.0
        %417 = vmatpush2.msra.mxu0 0.0
        %418 = vmatprep.subr.mxu0 0.0
        %419 = vmatpush2.msra.mxu0 0.0
        %420 = vmatprep.subr.mxu0 0.0
        %421 = vmatpush2.msra.mxu0 0.0
        %422 = vmatprep.mubr.f32.mxu0 0.0
        %423 = vmatmul.mubr.f32.gmra.mxu0 %v283
        %v424 = vpop.f32.mrf.mxu0
        %v425 = vadd.f32 0.0, %v424
        %v426 = vpop.f32.mrf.mxu0
        %427 = vdwg.mxu0
        %v428 = vlaneseq
        %v429 = vand.u32 %v428, 127
        %vm430 = vcmp.eq.s32.totalorder %v429, 0
        %v431 = vsel %vm430, 1, 0
        %v432 = vcvt.s32.f32 %v431
        %434 = vset.pattern.permute.xlu0 0
        %435 = vperm.xlu0 %434, %v274
        %v436 = vpop.permute.xlu0 %435
        %v438 = vmul.f32 %v436, %v432
        %439 = vmatprep.subr.mxu0 0.0
        %440 = vmatpush1.msra.mxu0 0.0
        %441 = vmatprep.subr.mxu0 0.0
        %442 = vmatpush1.msra.mxu0 0.0
        %443 = vmatprep.subr.mxu0 0.0
        %444 = vmatpush1.msra.mxu0 0.0
        %445 = vmatprep.subr.mxu0 0.0
        %446 = vmatpush1.msra.mxu0 0.0
        %447 = vmatprep.subr.mxu0 0.0
        %448 = vmatpush1.msra.mxu0 0.0
        %449 = vmatprep.subr.mxu0 0.0
        %450 = vmatpush1.msra.mxu0 0.0
        %451 = vmatprep.subr.mxu0 0.0
        %452 = vmatpush1.msra.mxu0 0.0
        %453 = vmatprep.subr.mxu0 0.0
        %454 = vmatpush1.msra.mxu0 0.0
        %455 = vmatprep.subr.mxu0 0.0
        %456 = vmatpush1.msra.mxu0 0.0
        %457 = vmatprep.subr.mxu0 0.0
        %458 = vmatpush1.msra.mxu0 0.0
        %459 = vmatprep.subr.mxu0 0.0
        %460 = vmatpush1.msra.mxu0 0.0
        %461 = vmatprep.subr.mxu0 0.0
        %462 = vmatpush1.msra.mxu0 0.0
        %463 = vmatprep.subr.mxu0 0.0
        %464 = vmatpush1.msra.mxu0 0.0
        %465 = vmatprep.subr.mxu0 0.0
        %466 = vmatpush1.msra.mxu0 0.0
        %467 = vmatprep.subr.mxu0 0.0
        %468 = vmatpush1.msra.mxu0 %v277
        %469 = vmatprep.subr.mxu0 0.0
        %470 = vmatpush1.msra.mxu0 %v276
        %471 = vmatprep.subr.mxu0 0.0
        %472 = vmatpush2.msra.mxu0 0.0
        %473 = vmatprep.subr.mxu0 0.0
        %474 = vmatpush2.msra.mxu0 0.0
        %475 = vmatprep.subr.mxu0 0.0
        %476 = vmatpush2.msra.mxu0 0.0
        %477 = vmatprep.subr.mxu0 0.0
        %478 = vmatpush2.msra.mxu0 0.0
        %479 = vmatprep.subr.mxu0 0.0
        %480 = vmatpush2.msra.mxu0 0.0
        %481 = vmatprep.subr.mxu0 0.0
        %482 = vmatpush2.msra.mxu0 0.0
        %483 = vmatprep.subr.mxu0 0.0
        %484 = vmatpush2.msra.mxu0 0.0
        %485 = vmatprep.subr.mxu0 0.0
        %486 = vmatpush2.msra.mxu0 0.0
        %487 = vmatprep.subr.mxu0 0.0
        %488 = vmatpush2.msra.mxu0 0.0
        %489 = vmatprep.subr.mxu0 0.0
        %490 = vmatpush2.msra.mxu0 0.0
        %491 = vmatprep.subr.mxu0 0.0
        %492 = vmatpush2.msra.mxu0 0.0
        %493 = vmatprep.subr.mxu0 0.0
        %494 = vmatpush2.msra.mxu0 0.0
        %495 = vmatprep.subr.mxu0 0.0
        %496 = vmatpush2.msra.mxu0 0.0
        %497 = vmatprep.subr.mxu0 0.0
        %498 = vmatpush2.msra.mxu0 0.0
        %499 = vmatprep.subr.mxu0 0.0
        %500 = vmatpush2.msra.mxu0 0.0
        %501 = vmatprep.subr.mxu0 0.0
        %502 = vmatpush2.msra.mxu0 0.0
        %503 = vmatprep.mubr.f32.mxu0 0.0
        %504 = vmatmul.mubr.f32.gmra.mxu0 %v283
        %v505 = vpop.f32.mrf.mxu0
        %v506 = vadd.f32 %v438, %v505
        %v507 = vpop.f32.mrf.mxu0
        %508 = vdwg.mxu0
        %v509 = vld [vmem:[%s2] sm:$0xf]
        %s510 = scalar_lea.vmem %s2, 4
        %v511 = vld [vmem:[%s510] sm:$0xf]
        %vm512 = vcmask 31744
        %v514 = vsel %vm512, %v511, 0
        %vm516 = vcmask 1043456
        %v518 = vsel %vm516, %v352, 0
        %520 = vmatprep.subr.mxu0 0.0
        %521 = vmatpush1.msra.mxu0 0.0
        %522 = vmatprep.subr.mxu0 0.0
        %523 = vmatpush1.msra.mxu0 0.0
        %524 = vmatprep.subr.mxu0 0.0
        %525 = vmatpush1.msra.mxu0 0.0
        %526 = vmatprep.subr.mxu0 0.0
        %527 = vmatpush1.msra.mxu0 0.0
        %528 = vmatprep.subr.mxu0 0.0
        %529 = vmatpush1.msra.mxu0 0.0
        %530 = vmatprep.subr.mxu0 0.0
        %531 = vmatpush1.msra.mxu0 0.0
        %532 = vmatprep.subr.mxu0 0.0
        %533 = vmatpush1.msra.mxu0 0.0
        %534 = vmatprep.subr.mxu0 0.0
        %535 = vmatpush1.msra.mxu0 0.0
        %536 = vmatprep.subr.mxu0 0.0
        %537 = vmatpush1.msra.mxu0 0.0
        %538 = vmatprep.subr.mxu0 0.0
        %539 = vmatpush1.msra.mxu0 0.0
        %540 = vmatprep.subr.mxu0 0.0
        %541 = vmatpush1.msra.mxu0 0.0
        %542 = vmatprep.subr.mxu0 0.0
        %543 = vmatpush1.msra.mxu0 0.0
        %544 = vmatprep.subr.mxu0 0.0
        %545 = vmatpush1.msra.mxu0 0.0
        %546 = vmatprep.subr.mxu0 0.0
        %547 = vmatpush1.msra.mxu0 0.0
        %548 = vmatprep.subr.mxu0 0.0
        %549 = vmatpush1.msra.mxu0 0.0
        %550 = vmatprep.subr.mxu0 0.0
        %551 = vmatpush1.msra.mxu0 %v518
        %552 = vmatprep.subr.mxu0 0.0
        %553 = vmatpush2.msra.mxu0 0.0
        %554 = vmatprep.subr.mxu0 0.0
        %555 = vmatpush2.msra.mxu0 0.0
        %556 = vmatprep.subr.mxu0 0.0
        %557 = vmatpush2.msra.mxu0 0.0
        %558 = vmatprep.subr.mxu0 0.0
        %559 = vmatpush2.msra.mxu0 0.0
        %560 = vmatprep.subr.mxu0 0.0
        %561 = vmatpush2.msra.mxu0 0.0
        %562 = vmatprep.subr.mxu0 0.0
        %563 = vmatpush2.msra.mxu0 0.0
        %564 = vmatprep.subr.mxu0 0.0
        %565 = vmatpush2.msra.mxu0 0.0
        %566 = vmatprep.subr.mxu0 0.0
        %567 = vmatpush2.msra.mxu0 0.0
        %568 = vmatprep.subr.mxu0 0.0
        %569 = vmatpush2.msra.mxu0 0.0
        %570 = vmatprep.subr.mxu0 0.0
        %571 = vmatpush2.msra.mxu0 0.0
        %572 = vmatprep.subr.mxu0 0.0
        %573 = vmatpush2.msra.mxu0 0.0
        %574 = vmatprep.subr.mxu0 0.0
        %575 = vmatpush2.msra.mxu0 0.0
        %576 = vmatprep.subr.mxu0 0.0
        %577 = vmatpush2.msra.mxu0 0.0
        %578 = vmatprep.subr.mxu0 0.0
        %579 = vmatpush2.msra.mxu0 0.0
        %580 = vmatprep.subr.mxu0 0.0
        %581 = vmatpush2.msra.mxu0 0.0
        %582 = vmatprep.subr.mxu0 0.0
        %583 = vmatpush2.msra.mxu0 0.0
        %584 = vmatprep.mubr.f32.mxu0 0.0
        %585 = vmatmul.mubr.f32.gmra.mxu0 %v514
        %v586 = vpop.f32.mrf.mxu0
        %v587 = vadd.f32 0.0, %v586
        %v588 = vpop.f32.mrf.mxu0
        %589 = vdwg.mxu0
        %v591 = vsel %vm512, %v509, 0
        %v594 = vsel %vm516, %v506, 0
        %596 = vmatprep.subr.mxu0 0.0
        %597 = vmatpush1.msra.mxu0 0.0
        %598 = vmatprep.subr.mxu0 0.0
        %599 = vmatpush1.msra.mxu0 0.0
        %600 = vmatprep.subr.mxu0 0.0
        %601 = vmatpush1.msra.mxu0 0.0
        %602 = vmatprep.subr.mxu0 0.0
        %603 = vmatpush1.msra.mxu0 0.0
        %604 = vmatprep.subr.mxu0 0.0
        %605 = vmatpush1.msra.mxu0 0.0
        %606 = vmatprep.subr.mxu0 0.0
        %607 = vmatpush1.msra.mxu0 0.0
        %608 = vmatprep.subr.mxu0 0.0
        %609 = vmatpush1.msra.mxu0 0.0
        %610 = vmatprep.subr.mxu0 0.0
        %611 = vmatpush1.msra.mxu0 0.0
        %612 = vmatprep.subr.mxu0 0.0
        %613 = vmatpush1.msra.mxu0 0.0
        %614 = vmatprep.subr.mxu0 0.0
        %615 = vmatpush1.msra.mxu0 0.0
        %616 = vmatprep.subr.mxu0 0.0
        %617 = vmatpush1.msra.mxu0 0.0
        %618 = vmatprep.subr.mxu0 0.0
        %619 = vmatpush1.msra.mxu0 0.0
        %620 = vmatprep.subr.mxu0 0.0
        %621 = vmatpush1.msra.mxu0 0.0
        %622 = vmatprep.subr.mxu0 0.0
        %623 = vmatpush1.msra.mxu0 0.0
        %624 = vmatprep.subr.mxu0 0.0
        %625 = vmatpush1.msra.mxu0 0.0
        %626 = vmatprep.subr.mxu0 0.0
        %627 = vmatpush1.msra.mxu0 %v594
        %628 = vmatprep.subr.mxu0 0.0
        %629 = vmatpush2.msra.mxu0 0.0
        %630 = vmatprep.subr.mxu0 0.0
        %631 = vmatpush2.msra.mxu0 0.0
        %632 = vmatprep.subr.mxu0 0.0
        %633 = vmatpush2.msra.mxu0 0.0
        %634 = vmatprep.subr.mxu0 0.0
        %635 = vmatpush2.msra.mxu0 0.0
        %636 = vmatprep.subr.mxu0 0.0
        %637 = vmatpush2.msra.mxu0 0.0
        %638 = vmatprep.subr.mxu0 0.0
        %639 = vmatpush2.msra.mxu0 0.0
        %640 = vmatprep.subr.mxu0 0.0
        %641 = vmatpush2.msra.mxu0 0.0
        %642 = vmatprep.subr.mxu0 0.0
        %643 = vmatpush2.msra.mxu0 0.0
        %644 = vmatprep.subr.mxu0 0.0
        %645 = vmatpush2.msra.mxu0 0.0
        %646 = vmatprep.subr.mxu0 0.0
        %647 = vmatpush2.msra.mxu0 0.0
        %648 = vmatprep.subr.mxu0 0.0
        %649 = vmatpush2.msra.mxu0 0.0
        %650 = vmatprep.subr.mxu0 0.0
        %651 = vmatpush2.msra.mxu0 0.0
        %652 = vmatprep.subr.mxu0 0.0
        %653 = vmatpush2.msra.mxu0 0.0
        %654 = vmatprep.subr.mxu0 0.0
        %655 = vmatpush2.msra.mxu0 0.0
        %656 = vmatprep.subr.mxu0 0.0
        %657 = vmatpush2.msra.mxu0 0.0
        %658 = vmatprep.subr.mxu0 0.0
        %659 = vmatpush2.msra.mxu0 0.0
        %660 = vmatprep.mubr.f32.mxu0 0.0
        %661 = vmatmul.mubr.f32.gmra.mxu0 %v591
        %v662 = vpop.f32.mrf.mxu0
        %v663 = vadd.f32 %v587, %v662
        %v664 = vpop.f32.mrf.mxu0
        %665 = vdwg.mxu0
        %s666 = scalar_lea.vmem %s2, 8
        %v667 = vld [vmem:[%s666] sm:$0xf]
        %v669 = vsel %vm512, %v667, 0
        %v672 = vsel %vm516, %v425, 0
        %674 = vmatprep.subr.mxu0 0.0
        %675 = vmatpush1.msra.mxu0 0.0
        %676 = vmatprep.subr.mxu0 0.0
        %677 = vmatpush1.msra.mxu0 0.0
        %678 = vmatprep.subr.mxu0 0.0
        %679 = vmatpush1.msra.mxu0 0.0
        %680 = vmatprep.subr.mxu0 0.0
        %681 = vmatpush1.msra.mxu0 0.0
        %682 = vmatprep.subr.mxu0 0.0
        %683 = vmatpush1.msra.mxu0 0.0
        %684 = vmatprep.subr.mxu0 0.0
        %685 = vmatpush1.msra.mxu0 0.0
        %686 = vmatprep.subr.mxu0 0.0
        %687 = vmatpush1.msra.mxu0 0.0
        %688 = vmatprep.subr.mxu0 0.0
        %689 = vmatpush1.msra.mxu0 0.0
        %690 = vmatprep.subr.mxu0 0.0
        %691 = vmatpush1.msra.mxu0 0.0
        %692 = vmatprep.subr.mxu0 0.0
        %693 = vmatpush1.msra.mxu0 0.0
        %694 = vmatprep.subr.mxu0 0.0
        %695 = vmatpush1.msra.mxu0 0.0
        %696 = vmatprep.subr.mxu0 0.0
        %697 = vmatpush1.msra.mxu0 0.0
        %698 = vmatprep.subr.mxu0 0.0
        %699 = vmatpush1.msra.mxu0 0.0
        %700 = vmatprep.subr.mxu0 0.0
        %701 = vmatpush1.msra.mxu0 0.0
        %702 = vmatprep.subr.mxu0 0.0
        %703 = vmatpush1.msra.mxu0 0.0
        %704 = vmatprep.subr.mxu0 0.0
        %705 = vmatpush1.msra.mxu0 %v672
        %706 = vmatprep.subr.mxu0 0.0
        %707 = vmatpush2.msra.mxu0 0.0
        %708 = vmatprep.subr.mxu0 0.0
        %709 = vmatpush2.msra.mxu0 0.0
        %710 = vmatprep.subr.mxu0 0.0
        %711 = vmatpush2.msra.mxu0 0.0
        %712 = vmatprep.subr.mxu0 0.0
        %713 = vmatpush2.msra.mxu0 0.0
        %714 = vmatprep.subr.mxu0 0.0
        %715 = vmatpush2.msra.mxu0 0.0
        %716 = vmatprep.subr.mxu0 0.0
        %717 = vmatpush2.msra.mxu0 0.0
        %718 = vmatprep.subr.mxu0 0.0
        %719 = vmatpush2.msra.mxu0 0.0
        %720 = vmatprep.subr.mxu0 0.0
        %721 = vmatpush2.msra.mxu0 0.0
        %722 = vmatprep.subr.mxu0 0.0
        %723 = vmatpush2.msra.mxu0 0.0
        %724 = vmatprep.subr.mxu0 0.0
        %725 = vmatpush2.msra.mxu0 0.0
        %726 = vmatprep.subr.mxu0 0.0
        %727 = vmatpush2.msra.mxu0 0.0
        %728 = vmatprep.subr.mxu0 0.0
        %729 = vmatpush2.msra.mxu0 0.0
        %730 = vmatprep.subr.mxu0 0.0
        %731 = vmatpush2.msra.mxu0 0.0
        %732 = vmatprep.subr.mxu0 0.0
        %733 = vmatpush2.msra.mxu0 0.0
        %734 = vmatprep.subr.mxu0 0.0
        %735 = vmatpush2.msra.mxu0 0.0
        %736 = vmatprep.subr.mxu0 0.0
        %737 = vmatpush2.msra.mxu0 0.0
        %738 = vmatprep.mubr.f32.mxu0 0.0
        %739 = vmatmul.mubr.f32.gmra.mxu0 %v669
        %v740 = vpop.f32.mrf.mxu0
        %v741 = vadd.f32 0.0, %v740
        %v742 = vpop.f32.mrf.mxu0
        %743 = vdwg.mxu0
        %v744 = vadd.f32 %v663, %v741
        %746 = vset.pattern.permute.xlu0 0
        %747 = vperm.xlu0 %746, %v275
        %v748 = vpop.permute.xlu0 %747
        %v750 = vadd.f32 %v744, %v748
        %vm751 = vcmask 60416
        %752 = vst.msk [vmem:[%s258] sm:$0xf] %vm751, %v750
        %s753 = sand.u32 %s160, 1
        %s754 = scalar_lea.sflag [#allocation3], %s753
        %s755 = sand.u32 %s160, 1
        %s756 = smul.addr %s755, 4
        %s757 = scalar_lea.vmem [#allocation2], %s756
        // Predicated region
        $region41: #{tpu_custom_call.1} parent=39 // pred_check
          %p758 = pneg %p170
        $region42: #{tpu_custom_call.1} parent=39 // pred_check_branch
          %760 = sbr.rel (%p758) target = $region44
        $region43: #{tpu_custom_call.1} parent=39 // pred_region
          %s762 = ssub.s32 64, 64
          %763 = vsyncadd %s754, %s762
          %s764 = sadd.s32 %s24, %s23
          %s765 = smul.addr %s764, 64
          %s766 = scalar_lea.hbm %s5, %s765
          %s768 = sshll.u32 %s757, 4
          %s769 = int_to_ptr.vmem [resolvable:$true] %s768
          %771 = dma.vmem_to_hbm [thread:$0]  %s769, 64, %s766, %s754
        $region44: #{tpu_custom_call.1} parent=39 // pred_fallthru
          _
      $region40: #{tpu_custom_call.1} parent=5 // pred_fallthru
        _
      %p772 = scmp.le.s32.totalorder 2, %s14
      // Predicated region
      $region45: #{tpu_custom_call.1} parent=5 // pred_check
        %p773 = pneg %p772
      $region46: #{tpu_custom_call.1} parent=5 // pred_check_branch
        %775 = sbr.rel (%p773) target = $region48
      $region47: #{tpu_custom_call.1} parent=5 // pred_region
        %s776 = ssub.s32 %s14, 2
        // Predicated region
        $region49: #{tpu_custom_call.1} parent=47 // pred_check
          %p777 = pneg %p176
        $region50: #{tpu_custom_call.1} parent=47 // pred_check_branch
          %779 = sbr.rel (%p777) target = $region52
        $region51: #{tpu_custom_call.1} parent=47 // pred_region
          %s780 = sand.u32 %s161, 1
          %s781 = scalar_lea.sflag [#allocation3], %s780
          %s782 = sand.u32 %s161, 1
          %s783 = smul.addr %s782, 4
          %s784 = scalar_lea.vmem [#allocation2], %s783
          %785 = dma.done %s781, 64
        $region52: #{tpu_custom_call.1} parent=47 // pred_fallthru
          _
      $region48: #{tpu_custom_call.1} parent=5 // pred_fallthru
        _
    $region6: #{tpu_custom_call.1} parent=1 // loop_footer
      %s18 = sadd.s32 1, %s14
    $region7: #{tpu_custom_call.1} parent=1 // loop_footer_branch
      %13 = sbr.rel target = $region3
    $region8: #{tpu_custom_call.1} parent=1 // loop_exit
      _
    %786 = vsyncpa [#allocation3], 1
    %s787 = scalar_lea.sflag [#allocation3], 1
    %788 = vsyncpa %s787, 1

</llo_original>
